<compile_context>
chip_gen: v7x
topology: tpu7x:2x2x1
jax: 0.10.0
libtpu: 0.0.40
codegen_flags: <defaults>
</compile_context>

<pallas_src>
import functools

import jax
import jax.numpy as jnp
from jax.experimental import pallas as pl
from jax.experimental.pallas import tpu as pltpu

_MIB = 1024 * 1024


def _round_up(n, m):
    return (n + m - 1) // m * m


def _vmem_capacity_bytes():
    """Per-core VMEM capacity (64 MiB on v7x, 128 MiB on v5e/v6e)."""
    try:
        return int(pltpu.get_tpu_info().vmem_capacity_bytes)
    except Exception:
        return 128 * _MIB


@functools.lru_cache(maxsize=None)
def _supports_single_buffer():
    """One-time probe: can a grid-invariant BlockSpec use pl.Buffered(1)?

    Isolated in its own tiny pallas_call so a failure here can never be confused
    with a genuine error (e.g. VMEM overflow) from the real MLP kernel.
    """
    if not hasattr(pl, "Buffered"):
        return False

    def _copy(x_ref, o_ref):
        o_ref[...] = x_ref[...]

    try:
        fn = pl.pallas_call(
            _copy,
            out_shape=jax.ShapeDtypeStruct((8, 128), jnp.float32),
            grid_spec=pltpu.PrefetchScalarGridSpec(
                num_scalar_prefetch=0,
                grid=(1,),
                in_specs=[pl.BlockSpec((8, 128), lambda i: (0, 0),
                                       pipeline_mode=pl.Buffered(1))],
                out_specs=pl.BlockSpec((8, 128), lambda i: (0, 0)),
            ),
        )
        jax.block_until_ready(fn(jnp.zeros((8, 128), jnp.float32)))
        return True
    except Exception:
        return False


# ----------------------------- kernels --------------------------------------


def _mlp_kernel_resident(x_ref, w1_ref, b1_ref, w2_ref, b2_ref, o_ref):
    """Both weight matrices fully VMEM-resident; grid = (batch tiles,)."""
    # Cast the x tile to the matmul dtype on the VPU (hidden under the MXU),
    # accumulate in f32; bias + LeakyReLU(0.2) in f32.
    h = jnp.dot(x_ref[...].astype(w1_ref.dtype), w1_ref[...],
                preferred_element_type=jnp.float32)
    h = h + b1_ref[...]
    h = jnp.maximum(h, 0.2 * h)                      # LeakyReLU(0.2)
    y = jnp.dot(h.astype(w2_ref.dtype), w2_ref[...],
                preferred_element_type=jnp.float32)
    y = y + b2_ref[...]
    o_ref[...] = jnp.maximum(y, 0.0).astype(o_ref.dtype)


def _mlp_kernel_streamed(x_ref, w1_ref, b1_ref, w2_ref, b2_ref, o_ref, h_ref):
    """Grid = (batch tile i [parallel], W2 column block j [arbitrary]).

    h only depends on the batch tile, so it is computed once per batch tile
    (j == 0) into a persistent VMEM scratch (stored in the matmul dtype, which
    is exactly what the second MXU matmul consumes) and reused for every
    streamed (out_p, tile_n) block of W2.
    """
    @pl.when(pl.program_id(1) == 0)
    def _():
        h = jnp.dot(x_ref[...].astype(w1_ref.dtype), w1_ref[...],
                    preferred_element_type=jnp.float32)
        h = h + b1_ref[...]
        h = jnp.maximum(h, 0.2 * h)                  # LeakyReLU(0.2)
        h_ref[...] = h.astype(h_ref.dtype)

    y = jnp.dot(h_ref[...], w2_ref[...], preferred_element_type=jnp.float32)
    y = y + b2_ref[...]
    o_ref[...] = jnp.maximum(y, 0.0).astype(o_ref.dtype)


# --------------------------- tiling selection --------------------------------


def _vmem_estimate(tile_b, tile_n, in_p, out_p, x_bytes, o_bytes, mm_bytes,
                   weight_bufs, streamed):
    est = 2 * tile_b * in_p * x_bytes                 # x tiles (double-buffered)
    est += weight_bufs * in_p * out_p * mm_bytes      # W1 (resident)
    est += weight_bufs * out_p * 4                    # b1
    if streamed:
        est += 2 * out_p * tile_n * mm_bytes          # W2 column blocks (dbl buf)
        est += 2 * tile_n * 4                         # b2 blocks
        est += tile_b * out_p * mm_bytes              # h scratch
    else:
        est += weight_bufs * out_p * out_p * mm_bytes  # W2 (resident)
        est += weight_bufs * out_p * 4                 # b2
    est += 2 * tile_b * tile_n * o_bytes              # output tiles (dbl buf)
    est += tile_b * out_p * 4 + tile_b * tile_n * 4   # compiler-managed f32 h/y
    return est


def _divisor_tiles(out_p):
    """Multiples of 128 that divide out_p, descending."""
    return [t for t in range(out_p, 0, -128) if out_p % t == 0]


def _select_tiling(B, in_p, out_p, tile_b_req, x_bytes, o_bytes, mm_bytes,
                   weight_bufs, budget):
    # Generation-aware default batch tile: 512 where VMEM is plentiful
    # (v5e/v6e, 128 MiB), 256 on tighter v7x (64 MiB).
    if tile_b_req is None:
        tile_b_req = 512 if budget >= 80 * _MIB else 256

    # Multiple of 8, never larger than the (8-rounded) batch.
    tile_b = max(8, _round_up(min(tile_b_req, _round_up(B, 8)), 8))

    # Prefer >= 2 batch tiles so a v7x TensorCore pair both get work.
    if _round_up(B, tile_b) // tile_b == 1 and tile_b >= 256:
        tile_b = max(8, _round_up(tile_b // 2, 8))

    # Shrink tile_b if even the most aggressive streaming config cannot fit.
    while tile_b > 8 and _vmem_estimate(tile_b, 128, in_p, out_p, x_bytes,
                                        o_bytes, mm_bytes, weight_bufs,
                                        True) > budget:
        tile_b = max(8, _round_up(tile_b // 2, 8))

    # N tiling: keep W2 resident if it fits, otherwise stream column blocks.
    if _vmem_estimate(tile_b, out_p, in_p, out_p, x_bytes, o_bytes, mm_bytes,
                      weight_bufs, False) <= budget:
        return tile_b, out_p, False
    for tn in _divisor_tiles(out_p):
        if _vmem_estimate(tile_b, tn, in_p, out_p, x_bytes, o_bytes, mm_bytes,
                          weight_bufs, True) <= budget:
            return tile_b, tn, True
    return tile_b, 128, True   # best effort for extreme shapes


# ------------------------------- wrapper -------------------------------------


def mlp_forward(x, w1, b1, w2, b2, *, tile_b=None, matmul_dtype=jnp.bfloat16,
                out_dtype=None, _force_tile_n=None):
    """Fused MLP forward: ReLU(LeakyReLU_{0.2}(x @ W1 + b1) @ W2 + b2).

    x : (B, in_dim)           w1: (in_dim, out_dim)   b1: (out_dim,) or (1, out_dim)
    w2: (out_dim, out_dim)    b2: (out_dim,) or (1, out_dim)
    out_dtype=None -> x.dtype (pass jnp.bfloat16 to halve output writeback, v5e).
    """
    B, in_dim = x.shape
    out_dim = w1.shape[1]
    out_dtype = x.dtype if out_dtype is None else out_dtype

    # Lane-dense (multiple-of-128) feature dims.
    in_p = _round_up(in_dim, 128)
    out_p = _round_up(out_dim, 128)

    x_bytes = jnp.dtype(x.dtype).itemsize
    o_bytes = jnp.dtype(out_dtype).itemsize
    mm_bytes = jnp.dtype(matmul_dtype).itemsize

    capacity = _vmem_capacity_bytes()
    budget = int(0.80 * capacity)

    single_buf = _supports_single_buffer()
    weight_bufs = 1 if single_buf else 2

    tile_b, tile_n, streamed = _select_tiling(
        B, in_p, out_p, tile_b, x_bytes, o_bytes, mm_bytes, weight_bufs, budget)

    if _force_tile_n is not None:   # test/tuning hook
        assert _force_tile_n % 128 == 0 and out_p % _force_tile_n == 0
        tile_n = _force_tile_n
        streamed = tile_n < out_p

    B_pad = _round_up(B, tile_b)
    grid_b = B_pad // tile_b
    num_n = out_p // tile_n

    # x stays in its native dtype (cast to bf16 happens inside the kernel) and
    # is only padded (zero rows/cols, mathematically inert) when misaligned.
    if (B_pad, in_p) != (B, in_dim):
        x_in = jnp.pad(x, ((0, B_pad - B), (0, in_p - in_dim)))
    else:
        x_in = x

    b1 = jnp.asarray(b1).reshape(1, -1)
    b2 = jnp.asarray(b2).reshape(1, -1)
    w1p = jnp.pad(w1, ((0, in_p - in_dim), (0, out_p - out_dim))).astype(matmul_dtype)
    w2p = jnp.pad(w2, ((0, out_p - out_dim), (0, out_p - out_dim))).astype(matmul_dtype)
    b1p = jnp.pad(b1, ((0, 0), (0, out_p - out_dim))).astype(jnp.float32)
    b2p = jnp.pad(b2, ((0, 0), (0, out_p - out_dim))).astype(jnp.float32)

    vmem_est = _vmem_estimate(tile_b, tile_n, in_p, out_p, x_bytes, o_bytes,
                              mm_bytes, weight_bufs, streamed)
    vmem_limit = int(min(max(1.3 * vmem_est, 32 * _MIB), 0.92 * capacity))

    flops = 2 * B_pad * (in_p * out_p + out_p * out_p)
    w2_reads = grid_b if streamed else 1
    bytes_accessed = int(B_pad * in_p * x_bytes
                         + in_p * out_p * mm_bytes
                         + w2_reads * out_p * out_p * mm_bytes
                         + (1 + w2_reads) * out_p * 4
                         + B_pad * out_p * o_bytes)
    cost = pl.CostEstimate(flops=int(flops), transcendentals=0,
                           bytes_accessed=bytes_accessed)

    # Grid-invariant (resident) operands: single-buffer to halve VMEM footprint.
    res_kw = {"pipeline_mode": pl.Buffered(1)} if single_buf else {}

    if not streamed:
        out = pl.pallas_call(
            _mlp_kernel_resident,
            out_shape=jax.ShapeDtypeStruct((B_pad, out_p), out_dtype),
            grid_spec=pltpu.PrefetchScalarGridSpec(
                num_scalar_prefetch=0,
                grid=(grid_b,),
                in_specs=[
                    pl.BlockSpec((tile_b, in_p), lambda i: (i, 0)),          # x tile
                    pl.BlockSpec((in_p, out_p), lambda i: (0, 0), **res_kw),  # W1
                    pl.BlockSpec((1, out_p), lambda i: (0, 0), **res_kw),     # b1
                    pl.BlockSpec((out_p, out_p), lambda i: (0, 0), **res_kw),  # W2
                    pl.BlockSpec((1, out_p), lambda i: (0, 0), **res_kw),     # b2
                ],
                out_specs=pl.BlockSpec((tile_b, out_p), lambda i: (i, 0)),
            ),
            compiler_params=pltpu.CompilerParams(
                dimension_semantics=("parallel",),
                vmem_limit_bytes=vmem_limit),
            cost_estimate=cost,
        )(x_in, w1p, b1p, w2p, b2p)
    else:
        out = pl.pallas_call(
            _mlp_kernel_streamed,
            out_shape=jax.ShapeDtypeStruct((B_pad, out_p), out_dtype),
            grid_spec=pltpu.PrefetchScalarGridSpec(
                num_scalar_prefetch=0,
                grid=(grid_b, num_n),
                in_specs=[
                    pl.BlockSpec((tile_b, in_p), lambda i, j: (i, 0)),          # x tile
                    pl.BlockSpec((in_p, out_p), lambda i, j: (0, 0), **res_kw),  # W1
                    pl.BlockSpec((1, out_p), lambda i, j: (0, 0), **res_kw),     # b1
                    pl.BlockSpec((out_p, tile_n), lambda i, j: (0, j)),          # W2 blk
                    pl.BlockSpec((1, tile_n), lambda i, j: (0, j)),              # b2 blk
                ],
                out_specs=pl.BlockSpec((tile_b, tile_n), lambda i, j: (i, j)),
                scratch_shapes=[pltpu.VMEM((tile_b, out_p), matmul_dtype)],     # h
            ),
            compiler_params=pltpu.CompilerParams(
                dimension_semantics=("parallel", "arbitrary"),
                vmem_limit_bytes=vmem_limit),
            cost_estimate=cost,
        )(x_in, w1p, b1p, w2p, b2p)

    if (B_pad, out_p) != (B, out_dim):
        out = out[:B, :out_dim]
    return out


def mlp_reference(x, w1, b1, w2, b2, matmul_dtype=None):
    """Pure-JAX reference. matmul_dtype mirrors the kernel's MXU input dtype."""
    dt = x.dtype if matmul_dtype is None else matmul_dtype
    b1 = jnp.asarray(b1).reshape(1, -1).astype(jnp.float32)
    b2 = jnp.asarray(b2).reshape(1, -1).astype(jnp.float32)
    h = jnp.dot(x.astype(dt), w1.astype(dt),
                preferred_element_type=jnp.float32) + b1
    h = jnp.maximum(h, 0.2 * h)
    y = jnp.dot(h.astype(dt), w2.astype(dt),
                preferred_element_type=jnp.float32) + b2
    return jnp.maximum(y, 0.0)


if __name__ == "__main__":
    key = jax.random.PRNGKey(0)

    # ---- Small-shape case (matches the PyTorch module at tiny sizes) ----
    B, in_dim, out_dim = 8, 32, 32
    k_x, k_w1, k_b1, k_w2, k_b2 = jax.random.split(key, 5)
    x = jax.random.normal(k_x, (B, in_dim), dtype=jnp.float32)
    bound1 = 1.0 / (in_dim ** 0.5)
    w1 = jax.random.uniform(k_w1, (in_dim, out_dim), jnp.float32, -bound1, bound1)
    b1 = jax.random.uniform(k_b1, (1, out_dim), jnp.float32, -bound1, bound1)
    bound2 = 1.0 / (out_dim ** 0.5)
    w2 = jax.random.uniform(k_w2, (out_dim, out_dim), jnp.float32, -bound2, bound2)
    b2 = jax.random.uniform(k_b2, (1, out_dim), jnp.float32, -bound2, bound2)

    out = mlp_forward(x, w1, b1, w2, b2)
    jax.block_until_ready(out)
    ref = mlp_reference(x, w1, b1, w2, b2, matmul_dtype=jnp.bfloat16)
    assert out.shape == (B, out_dim)
    assert jnp.allclose(out, ref, atol=2e-2, rtol=2e-2), "mismatch vs reference (small)"

    # ---- Larger case: exercises the multi-step batch grid (resident-W2 path) ----
    B2, d_in2, d_out2 = 512, 256, 384
    k2 = jax.random.split(jax.random.PRNGKey(1), 5)
    x2 = jax.random.normal(k2[0], (B2, d_in2), jnp.float32)
    bnd1 = 1.0 / (d_in2 ** 0.5)
    w1b = jax.random.uniform(k2[1], (d_in2, d_out2), jnp.float32, -bnd1, bnd1)
    b1b = jax.random.uniform(k2[2], (1, d_out2), jnp.float32, -bnd1, bnd1)
    bnd2 = 1.0 / (d_out2 ** 0.5)
    w2b = jax.random.uniform(k2[3], (d_out2, d_out2), jnp.float32, -bnd2, bnd2)
    b2b = jax.random.uniform(k2[4], (1, d_out2), jnp.float32, -bnd2, bnd2)
    ref2 = mlp_reference(x2, w1b, b1b, w2b, b2b, matmul_dtype=jnp.bfloat16)

    out2 = mlp_forward(x2, w1b, b1b, w2b, b2b, tile_b=256)   # grid = (2,)
    jax.block_until_ready(out2)
    assert out2.shape == (B2, d_out2)
    assert jnp.allclose(out2, ref2, atol=2e-2, rtol=2e-2), "mismatch vs reference (resident)"

    # ---- Same case forced through the streamed-W2 (N-tiled) kernel path ----
    out3 = mlp_forward(x2, w1b, b1b, w2b, b2b, tile_b=256, _force_tile_n=128)  # grid = (2, 3)
    jax.block_until_ready(out3)
    assert out3.shape == (B2, d_out2)
    assert jnp.allclose(out3, ref2, atol=2e-2, rtol=2e-2), "mismatch vs reference (streamed)"

    print("KERNEL_OK")
</pallas_src>

<mosaic_0001>
module attributes {stable_mosaic.version = 11 : i64} {
  func.func @_copy(%arg0: i32, %arg1: memref<8x128xf32, #tpu.memory_space<vmem>>, %arg2: memref<8x128xf32, #tpu.memory_space<vmem>>) attributes {dimension_semantics = [#tpu.dimension_semantics<arbitrary>], iteration_bounds = array<i64: 1>, scalar_prefetch = 0 : i64, scratch_operands = 0 : i64, tpu.core_type = #tpu.core_type<tc>, window_params = [{pipeline_mode = #tpu.pipeline_mode<synchronous>, transform_indices = @transform_0, window_bounds = array<i64: 8, 128>}, {pipeline_mode = #tpu.pipeline_mode<synchronous>, transform_indices = @transform_1, window_bounds = array<i64: 8, 128>}]} {
    %c0 = arith.constant 0 : index
    %c0_0 = arith.constant 0 : index
    %0 = vector.load %arg1[%c0, %c0_0] : memref<8x128xf32, #tpu.memory_space<vmem>>, vector<8x128xf32>
    %c0_1 = arith.constant 0 : index
    %c0_2 = arith.constant 0 : index
    %1 = vector.load %arg2[%c0_1, %c0_2] : memref<8x128xf32, #tpu.memory_space<vmem>>, vector<8x128xf32>
    tpu.vector_store %arg2[%c0_1, %c0_2], %0 {strides = array<i32>} : memref<8x128xf32, #tpu.memory_space<vmem>>, vector<8x128xf32>,
    return
  }
  func.func @transform_0(%arg0: i32) -> (i32, i32) {
    %c0_i32 = arith.constant 0 : i32
    %c0_i32_0 = arith.constant 0 : i32
    %c0_i32_1 = arith.constant 0 : i32
    return %c0_i32, %c0_i32_0 : i32, i32
  }
  func.func @transform_1(%arg0: i32) -> (i32, i32) {
    %c0_i32 = arith.constant 0 : i32
    %c0_i32_0 = arith.constant 0 : i32
    %c0_i32_1 = arith.constant 0 : i32
    return %c0_i32, %c0_i32_0 : i32, i32
  }
}

module attributes {stable_mosaic.version = 11 : i64} {
  func.func @_mlp_kernel_resident(%arg0: i32, %arg1: memref<8x128xf32, #tpu.memory_space<vmem>>, %arg2: memref<128x128xbf16, #tpu.memory_space<vmem>>, %arg3: memref<1x128xf32, #tpu.memory_space<vmem>>, %arg4: memref<128x128xbf16, #tpu.memory_space<vmem>>, %arg5: memref<1x128xf32, #tpu.memory_space<vmem>>, %arg6: memref<8x128xf32, #tpu.memory_space<vmem>>) attributes {dimension_semantics = [#tpu.dimension_semantics<parallel>], iteration_bounds = array<i64: 1>, scalar_prefetch = 0 : i64, scratch_operands = 0 : i64, tpu.core_type = #tpu.core_type<tc>, window_params = [{transform_indices = @transform_0, window_bounds = array<i64: 8, 128>}, {pipeline_mode = #tpu.pipeline_mode<synchronous>, transform_indices = @transform_1, window_bounds = array<i64: 128, 128>}, {pipeline_mode = #tpu.pipeline_mode<synchronous>, transform_indices = @transform_2, window_bounds = array<i64: 1, 128>}, {pipeline_mode = #tpu.pipeline_mode<synchronous>, transform_indices = @transform_3, window_bounds = array<i64: 128, 128>}, {pipeline_mode = #tpu.pipeline_mode<synchronous>, transform_indices = @transform_4, window_bounds = array<i64: 1, 128>}, {transform_indices = @transform_5, window_bounds = array<i64: 8, 128>}]} {
    %c0 = arith.constant 0 : index
    %c0_0 = arith.constant 0 : index
    %0 = vector.load %arg1[%c0, %c0_0] : memref<8x128xf32, #tpu.memory_space<vmem>>, vector<8x128xf32>
    %1 = arith.truncf %0 : vector<8x128xf32> to vector<8x128xbf16>
    %c0_1 = arith.constant 0 : index
    %c0_2 = arith.constant 0 : index
    %2 = vector.load %arg2[%c0_1, %c0_2] : memref<128x128xbf16, #tpu.memory_space<vmem>>, vector<128x128xbf16>
    %cst = arith.constant dense<0.000000e+00> : vector<8x128xf32>
    %3 = tpu.matmul %1, %2, %cst {dimension_numbers = #tpu.dot_dimension_numbers<[1], [0], [0], [1], [0, 0, 1, 1], [], []>} : vector<8x128xbf16>, vector<128x128xbf16>, vector<8x128xf32> -> vector<8x128xf32>
    %c0_3 = arith.constant 0 : index
    %c0_4 = arith.constant 0 : index
    %4 = vector.load %arg3[%c0_3, %c0_4] : memref<1x128xf32, #tpu.memory_space<vmem>>, vector<1x128xf32>
    %5 = vector.broadcast %4 : vector<1x128xf32> to vector<8x128xf32>
    %6 = arith.addf %3, %5 : vector<8x128xf32>
    %cst_5 = arith.constant 2.000000e-01 : f32
    %7 = vector.broadcast %cst_5 : f32 to vector<8x128xf32>
    %8 = arith.mulf %7, %6 : vector<8x128xf32>
    %9 = arith.maximumf %6, %8 : vector<8x128xf32>
    %10 = arith.truncf %9 : vector<8x128xf32> to vector<8x128xbf16>
    %c0_6 = arith.constant 0 : index
    %c0_7 = arith.constant 0 : index
    %11 = vector.load %arg4[%c0_6, %c0_7] : memref<128x128xbf16, #tpu.memory_space<vmem>>, vector<128x128xbf16>
    %cst_8 = arith.constant dense<0.000000e+00> : vector<8x128xf32>
    %12 = tpu.matmul %10, %11, %cst_8 {dimension_numbers = #tpu.dot_dimension_numbers<[1], [0], [0], [1], [0, 0, 1, 1], [], []>} : vector<8x128xbf16>, vector<128x128xbf16>, vector<8x128xf32> -> vector<8x128xf32>
    %c0_9 = arith.constant 0 : index
    %c0_10 = arith.constant 0 : index
    %13 = vector.load %arg5[%c0_9, %c0_10] : memref<1x128xf32, #tpu.memory_space<vmem>>, vector<1x128xf32>
    %14 = vector.broadcast %13 : vector<1x128xf32> to vector<8x128xf32>
    %15 = arith.addf %12, %14 : vector<8x128xf32>
    %cst_11 = arith.constant 0.000000e+00 : f32
    %16 = vector.broadcast %cst_11 : f32 to vector<8x128xf32>
    %17 = arith.maximumf %15, %16 : vector<8x128xf32>
    %c0_12 = arith.constant 0 : index
    %c0_13 = arith.constant 0 : index
    %18 = vector.load %arg6[%c0_12, %c0_13] : memref<8x128xf32, #tpu.memory_space<vmem>>, vector<8x128xf32>
    tpu.vector_store %arg6[%c0_12, %c0_13], %17 {strides = array<i32>} : memref<8x128xf32, #tpu.memory_space<vmem>>, vector<8x128xf32>,
    return
  }
  func.func @transform_0(%arg0: i32) -> (i32, i32) {
    %c0_i32 = arith.constant 0 : i32
    %c0_i32_0 = arith.constant 0 : i32
    return %arg0, %c0_i32 : i32, i32
  }
  func.func @transform_1(%arg0: i32) -> (i32, i32) {
    %c0_i32 = arith.constant 0 : i32
    %c0_i32_0 = arith.constant 0 : i32
    %c0_i32_1 = arith.constant 0 : i32
    return %c0_i32, %c0_i32_0 : i32, i32
  }
  func.func @transform_2(%arg0: i32) -> (i32, i32) {
    %c0_i32 = arith.constant 0 : i32
    %c0_i32_0 = arith.constant 0 : i32
    %c0_i32_1 = arith.constant 0 : i32
    return %c0_i32, %c0_i32_0 : i32, i32
  }
  func.func @transform_3(%arg0: i32) -> (i32, i32) {
    %c0_i32 = arith.constant 0 : i32
    %c0_i32_0 = arith.constant 0 : i32
    %c0_i32_1 = arith.constant 0 : i32
    return %c0_i32, %c0_i32_0 : i32, i32
  }
  func.func @transform_4(%arg0: i32) -> (i32, i32) {
    %c0_i32 = arith.constant 0 : i32
    %c0_i32_0 = arith.constant 0 : i32
    %c0_i32_1 = arith.constant 0 : i32
    return %c0_i32, %c0_i32_0 : i32, i32
  }
  func.func @transform_5(%arg0: i32) -> (i32, i32) {
    %c0_i32 = arith.constant 0 : i32
    %c0_i32_0 = arith.constant 0 : i32
    return %arg0, %c0_i32 : i32, i32
  }
}

</mosaic_0001>

<llo_original>
// kernel: tpu_custom_call.1
$region0: #{tpu_custom_call.1}
  #allocation0 [shape = 'u32[]', space=smem, size = 0x4, offset = 0x4, fixed_abs, tag = 'smem constant byte address 0x4 - core index']
  #allocation1 [shape = 'u32[144,128]{1,0:T(1,128)}', space=vmem, size = 0x12000, scoped, tag = 'internal scratch']
  %s0 = inlined_call_operand.hbm [shape: f32[8,128], index: 0, kind: input, shape index: {}]
  %s1 = inlined_call_operand.hbm [shape: f32[8,128], index: 1, kind: output, shape index: {}]
  %s2 = sld [smem:[#allocation0]]
  $region18: #{tpu_custom_call.1} parent=0
    _
  %s4 = ssub.s32 1, %s2
  %s5 = scalar_select 0, %s4, %s2
  $region1: #{tpu_custom_call.1} parent=0
    #allocation2 [shape = 'u8[4096]{0}', space=vmem, size = 0x1000, scoped, tag = 'input window, operand 0, single buffered']
    #allocation3 [shape = 's32[1]{0}', space=sflag, size = 0x4, scoped, tag = 'scoped memory for tpu_custom_call.1']
    #allocation4 [shape = 's32[1]{0}', space=sflag, size = 0x4, scoped, tag = 'scoped memory for tpu_custom_call.1']
    #allocation5 [shape = 'u8[4096]{0}', space=vmem, size = 0x1000, scoped, tag = 'output window, operand 0, single buffered']
    %6 = vsyncpa [#allocation3], 0
    %7 = vsyncpa [#allocation4], 0
    // Predicated region
    $region2: #{tpu_custom_call.1} parent=1 // pred_check
      _
    $region3: #{tpu_custom_call.1} parent=1 // pred_check_branch
      %9 = sbr.rel (0) target = $region5
    $region4: #{tpu_custom_call.1} parent=1 // pred_region
      %s11 = ssub.s32 128, 128
      %12 = vsyncadd [#allocation3], %s11
      %s14 = sshll.u32 [#allocation2], 4
      %s15 = int_to_ptr.vmem [resolvable:$true] %s14
      %17 = dma.hbm_to_vmem [thread:$0]  %s0, 128, %s15, [#allocation3]
    $region5: #{tpu_custom_call.1} parent=1 // pred_fallthru
      _
    // Predicated region
    $region6: #{tpu_custom_call.1} parent=1 // pred_check
      _
    $region7: #{tpu_custom_call.1} parent=1 // pred_check_branch
      %19 = sbr.rel (0) target = $region9
    $region8: #{tpu_custom_call.1} parent=1 // pred_region
      %20 = dma.done [#allocation3], 128
    $region9: #{tpu_custom_call.1} parent=1 // pred_fallthru
      _
    %v21 = vld [vmem:[#allocation2] sm:$0xff]
    %22 = vst [vmem:[#allocation5] sm:$0xff] %v21
    // Predicated region
    $region10: #{tpu_custom_call.1} parent=1 // pred_check
      _
    $region11: #{tpu_custom_call.1} parent=1 // pred_check_branch
      %24 = sbr.rel (0) target = $region13
    $region12: #{tpu_custom_call.1} parent=1 // pred_region
      %s26 = ssub.s32 128, 128
      %27 = vsyncadd [#allocation4], %s26
      %s29 = sshll.u32 [#allocation5], 4
      %s30 = int_to_ptr.vmem [resolvable:$true] %s29
      %32 = dma.vmem_to_hbm [thread:$0]  %s30, 128, %s1, [#allocation4]
    $region13: #{tpu_custom_call.1} parent=1 // pred_fallthru
      _
    // Predicated region
    $region14: #{tpu_custom_call.1} parent=1 // pred_check
      _
    $region15: #{tpu_custom_call.1} parent=1 // pred_check_branch
      %34 = sbr.rel (0) target = $region17
    $region16: #{tpu_custom_call.1} parent=1 // pred_region
      %35 = dma.done [#allocation4], 128
    $region17: #{tpu_custom_call.1} parent=1 // pred_fallthru
      _
    %36 = vsyncpa [#allocation3], 1
    %37 = vsyncpa [#allocation4], 1

// kernel: tpu_custom_call.1
$region0: #{tpu_custom_call.1}
  #allocation0 [shape = 'u32[]', space=smem, size = 0x4, offset = 0x4, fixed_abs, tag = 'smem constant byte address 0x4 - core index']
  #allocation1 [shape = 'u32[144,128]{1,0:T(1,128)}', space=vmem, size = 0x12000, scoped, tag = 'internal scratch']
  %s0 = inlined_call_operand.hbm [shape: f32[8,128], index: 0, kind: input, shape index: {}]
  %s1 = inlined_call_operand.hbm [shape: bf16[128,128], index: 1, kind: input, shape index: {}]
  %s2 = inlined_call_operand.vmem [shape: f32[1,128], index: 2, kind: input, shape index: {}]
  %s3 = inlined_call_operand.hbm [shape: bf16[128,128], index: 3, kind: input, shape index: {}]
  %s4 = inlined_call_operand.vmem [shape: f32[1,128], index: 4, kind: input, shape index: {}]
  %s5 = inlined_call_operand.hbm [shape: f32[8,128], index: 5, kind: output, shape index: {}]
  %s6 = sld [smem:[#allocation0]]
  $region42: #{tpu_custom_call.1} parent=0
    _
  %s8 = ssub.s32 1, %s6
  %s9 = scalar_select 0, %s8, %s6
  $region1: #{tpu_custom_call.1} parent=0
    #allocation2 [shape = 'u8[4096]{0}', space=vmem, size = 0x1000, scoped, tag = 'input window, operand 0, single buffered']
    #allocation3 [shape = 's32[1]{0}', space=sflag, size = 0x4, scoped, tag = 'scoped memory for tpu_custom_call.1']
    #allocation4 [shape = 's32[1]{0}', space=sflag, size = 0x4, scoped, tag = 'scoped memory for tpu_custom_call.1']
    #allocation5 [shape = 'u8[32768]{0}', space=vmem, size = 0x8000, scoped, tag = 'input window, operand 1, single buffered']
    #allocation6 [shape = 's32[1]{0}', space=sflag, size = 0x4, scoped, tag = 'scoped memory for tpu_custom_call.1']
    #allocation7 [shape = 'u8[32768]{0}', space=vmem, size = 0x8000, scoped, tag = 'input window, operand 3, single buffered']
    #allocation8 [shape = 'u8[4096]{0}', space=vmem, size = 0x1000, scoped, tag = 'output window, operand 0, single buffered']
    %10 = vsyncpa [#allocation3], 0
    %11 = vsyncpa [#allocation6], 0
    %12 = vsyncpa [#allocation4], 0
    // Predicated region
    $region2: #{tpu_custom_call.1} parent=1 // pred_check
      _
    $region3: #{tpu_custom_call.1} parent=1 // pred_check_branch
      %14 = sbr.rel (0) target = $region5
    $region4: #{tpu_custom_call.1} parent=1 // pred_region
      %s16 = ssub.s32 128, 128
      %17 = vsyncadd [#allocation3], %s16
      %s19 = sshll.u32 [#allocation2], 4
      %s20 = int_to_ptr.vmem [resolvable:$true] %s19
      %22 = dma.hbm_to_vmem [thread:$0]  %s0, 128, %s20, [#allocation3]
    $region5: #{tpu_custom_call.1} parent=1 // pred_fallthru
      _
    // Predicated region
    $region6: #{tpu_custom_call.1} parent=1 // pred_check
      _
    $region7: #{tpu_custom_call.1} parent=1 // pred_check_branch
      %24 = sbr.rel (0) target = $region9
    $region8: #{tpu_custom_call.1} parent=1 // pred_region
      %s26 = ssub.s32 1024, 1024
      %27 = vsyncadd [#allocation6], %s26
      %s28 = sshll.u32 [#allocation5], 4
      %s29 = int_to_ptr.vmem [resolvable:$true] %s28
      %34 = dma.hbm_to_vmem [thread:$0]  %s1, 1024, %s29, [#allocation6], 64, 64, 4
    $region9: #{tpu_custom_call.1} parent=1 // pred_fallthru
      _
    // Predicated region
    $region10: #{tpu_custom_call.1} parent=1 // pred_check
      _
    $region11: #{tpu_custom_call.1} parent=1 // pred_check_branch
      %36 = sbr.rel (0) target = $region13
    $region12: #{tpu_custom_call.1} parent=1 // pred_region
      _
    $region13: #{tpu_custom_call.1} parent=1 // pred_fallthru
      _
    // Predicated region
    $region14: #{tpu_custom_call.1} parent=1 // pred_check
      _
    $region15: #{tpu_custom_call.1} parent=1 // pred_check_branch
      %38 = sbr.rel (0) target = $region17
    $region16: #{tpu_custom_call.1} parent=1 // pred_region
      %s40 = ssub.s32 1024, 1024
      %41 = vsyncadd [#allocation6], %s40
      %s42 = sshll.u32 [#allocation7], 4
      %s43 = int_to_ptr.vmem [resolvable:$true] %s42
      %48 = dma.hbm_to_vmem [thread:$0]  %s3, 1024, %s43, [#allocation6], 64, 64, 4
    $region17: #{tpu_custom_call.1} parent=1 // pred_fallthru
      _
    // Predicated region
    $region18: #{tpu_custom_call.1} parent=1 // pred_check
      _
    $region19: #{tpu_custom_call.1} parent=1 // pred_check_branch
      %50 = sbr.rel (0) target = $region21
    $region20: #{tpu_custom_call.1} parent=1 // pred_region
      _
    $region21: #{tpu_custom_call.1} parent=1 // pred_fallthru
      _
    // Predicated region
    $region22: #{tpu_custom_call.1} parent=1 // pred_check
      _
    $region23: #{tpu_custom_call.1} parent=1 // pred_check_branch
      %52 = sbr.rel (0) target = $region25
    $region24: #{tpu_custom_call.1} parent=1 // pred_region
      %53 = dma.done [#allocation3], 128
    $region25: #{tpu_custom_call.1} parent=1 // pred_fallthru
      _
    // Predicated region
    $region26: #{tpu_custom_call.1} parent=1 // pred_check
      _
    $region27: #{tpu_custom_call.1} parent=1 // pred_check_branch
      %55 = sbr.rel (0) target = $region29
    $region28: #{tpu_custom_call.1} parent=1 // pred_region
      %56 = dma.done [#allocation6], 1024
    $region29: #{tpu_custom_call.1} parent=1 // pred_fallthru
      _
    // Predicated region
    $region30: #{tpu_custom_call.1} parent=1 // pred_check
      _
    $region31: #{tpu_custom_call.1} parent=1 // pred_check_branch
      %58 = sbr.rel (0) target = $region33
    $region32: #{tpu_custom_call.1} parent=1 // pred_region
      %59 = dma.done [#allocation6], 1024
    $region33: #{tpu_custom_call.1} parent=1 // pred_fallthru
      _
    %v61 = vld [vmem:[#allocation2] sm:$0xff]
    %v62 = vpack.c.bf16 %v61, %v61
    %v63 = vld [vmem:[#allocation5] sm:$0xf]
    %v64 = vld [vmem:[#allocation5 + $0x4] sm:$0xf]
    %v65 = vld [vmem:[#allocation5 + $0x8] sm:$0xf]
    %v66 = vld [vmem:[#allocation5 + $0xc] sm:$0xf]
    %v67 = vld [vmem:[#allocation5 + $0x10] sm:$0xf]
    %v68 = vld [vmem:[#allocation5 + $0x14] sm:$0xf]
    %v69 = vld [vmem:[#allocation5 + $0x18] sm:$0xf]
    %v70 = vld [vmem:[#allocation5 + $0x1c] sm:$0xf]
    %v71 = vld [vmem:[#allocation5 + $0x20] sm:$0xf]
    %v72 = vld [vmem:[#allocation5 + $0x24] sm:$0xf]
    %v73 = vld [vmem:[#allocation5 + $0x28] sm:$0xf]
    %v74 = vld [vmem:[#allocation5 + $0x2c] sm:$0xf]
    %v75 = vld [vmem:[#allocation5 + $0x30] sm:$0xf]
    %v76 = vld [vmem:[#allocation5 + $0x34] sm:$0xf]
    %v77 = vld [vmem:[#allocation5 + $0x38] sm:$0xf]
    %v78 = vld [vmem:[#allocation5 + $0x3c] sm:$0xf]
    %v79 = vld [vmem:[%s2] sm:$0x1]
    %v81 = vlaneseq
    %v82 = vshrl.u32 %v81, 7
    %v83 = vsub.s32 0, %v82
    %v84 = vrot.slane %v79, %v83
    %v102 = vunpack.c.l.b16 %v63
    %v103 = vunpack.c.l.b16 %v64
    %v104 = vunpack.c.l.b16 %v65
    %v105 = vunpack.c.l.b16 %v66
    %v106 = vunpack.c.l.b16 %v67
    %v107 = vunpack.c.l.b16 %v68
    %v108 = vunpack.c.l.b16 %v69
    %v109 = vunpack.c.l.b16 %v70
    %v110 = vunpack.c.l.b16 %v71
    %v111 = vunpack.c.l.b16 %v72
    %v112 = vunpack.c.l.b16 %v73
    %v113 = vunpack.c.l.b16 %v74
    %v114 = vunpack.c.l.b16 %v75
    %v115 = vunpack.c.l.b16 %v76
    %v116 = vunpack.c.l.b16 %v77
    %v117 = vunpack.c.l.b16 %v78
    %v118 = vpack.c.b16 %v103, %v102
    %v119 = vpack.c.b16 %v105, %v104
    %v120 = vpack.c.b16 %v107, %v106
    %v121 = vpack.c.b16 %v109, %v108
    %v122 = vpack.c.b16 %v111, %v110
    %v123 = vpack.c.b16 %v113, %v112
    %v124 = vpack.c.b16 %v115, %v114
    %v125 = vpack.c.b16 %v117, %v116
    %134 = vmatprep.subr.bf16.mxu0 0
    %135 = vmatpush1.bf16.msra.mxu0 %v118
    %136 = vmatprep.subr.bf16.mxu0 0
    %137 = vmatpush1.bf16.msra.mxu0 %v119
    %138 = vmatprep.subr.bf16.mxu0 0
    %139 = vmatpush1.bf16.msra.mxu0 %v120
    %140 = vmatprep.subr.bf16.mxu0 0
    %141 = vmatpush1.bf16.msra.mxu0 %v121
    %142 = vmatprep.subr.bf16.mxu0 0
    %143 = vmatpush1.bf16.msra.mxu0 %v122
    %144 = vmatprep.subr.bf16.mxu0 0
    %145 = vmatpush1.bf16.msra.mxu0 %v123
    %146 = vmatprep.subr.bf16.mxu0 0
    %147 = vmatpush1.bf16.msra.mxu0 %v124
    %148 = vmatprep.subr.bf16.mxu0 0
    %149 = vmatpush1.bf16.msra.mxu0 %v125
    %150 = vmatprep.subr.bf16.mxu0 0
    %151 = vmatpush1.bf16.msra.mxu0 0
    %152 = vmatprep.subr.bf16.mxu0 0
    %153 = vmatpush1.bf16.msra.mxu0 0
    %154 = vmatprep.subr.bf16.mxu0 0
    %155 = vmatpush1.bf16.msra.mxu0 0
    %156 = vmatprep.subr.bf16.mxu0 0
    %157 = vmatpush1.bf16.msra.mxu0 0
    %158 = vmatprep.subr.bf16.mxu0 0
    %159 = vmatpush1.bf16.msra.mxu0 0
    %160 = vmatprep.subr.bf16.mxu0 0
    %161 = vmatpush1.bf16.msra.mxu0 0
    %162 = vmatprep.subr.bf16.mxu0 0
    %163 = vmatpush1.bf16.msra.mxu0 0
    %164 = vmatprep.subr.bf16.mxu0 0
    %165 = vmatpush1.bf16.msra.mxu0 0
    %166 = vmatprep.mubr.bf16.mxu0 0
    %167 = vmatmul.mubr.bf16.gmra.mrb[0].mxu0 %v62
    %v168 = vpop.f32.mrb[0].mxu0
    %v169 = vadd.f32 %v84, %v168
    %v170 = vpop.f32.mrb[0].mxu0
    %v171 = vpop.f32.mrb[0].mxu0
    %v172 = vpop.f32.mrb[0].mxu0
    %173 = vdwg.mxu0
    %v174 = vmul.f32 %v169, 0.2
    %v175 = vmax.f32 %v169, %v174
    %v176 = vpack.c.bf16 %v175, %v175
    %v177 = vld [vmem:[#allocation7] sm:$0xf]
    %v178 = vld [vmem:[#allocation7 + $0x4] sm:$0xf]
    %v179 = vld [vmem:[#allocation7 + $0x8] sm:$0xf]
    %v180 = vld [vmem:[#allocation7 + $0xc] sm:$0xf]
    %v181 = vld [vmem:[#allocation7 + $0x10] sm:$0xf]
    %v182 = vld [vmem:[#allocation7 + $0x14] sm:$0xf]
    %v183 = vld [vmem:[#allocation7 + $0x18] sm:$0xf]
    %v184 = vld [vmem:[#allocation7 + $0x1c] sm:$0xf]
    %v185 = vld [vmem:[#allocation7 + $0x20] sm:$0xf]
    %v186 = vld [vmem:[#allocation7 + $0x24] sm:$0xf]
    %v187 = vld [vmem:[#allocation7 + $0x28] sm:$0xf]
    %v188 = vld [vmem:[#allocation7 + $0x2c] sm:$0xf]
    %v189 = vld [vmem:[#allocation7 + $0x30] sm:$0xf]
    %v190 = vld [vmem:[#allocation7 + $0x34] sm:$0xf]
    %v191 = vld [vmem:[#allocation7 + $0x38] sm:$0xf]
    %v192 = vld [vmem:[#allocation7 + $0x3c] sm:$0xf]
    %v193 = vld [vmem:[%s4] sm:$0x1]
    %v195 = vlaneseq
    %v196 = vshrl.u32 %v195, 7
    %v197 = vsub.s32 0, %v196
    %v198 = vrot.slane %v193, %v197
    %v216 = vunpack.c.l.b16 %v177
    %v217 = vunpack.c.l.b16 %v178
    %v218 = vunpack.c.l.b16 %v179
    %v219 = vunpack.c.l.b16 %v180
    %v220 = vunpack.c.l.b16 %v181
    %v221 = vunpack.c.l.b16 %v182
    %v222 = vunpack.c.l.b16 %v183
    %v223 = vunpack.c.l.b16 %v184
    %v224 = vunpack.c.l.b16 %v185
    %v225 = vunpack.c.l.b16 %v186
    %v226 = vunpack.c.l.b16 %v187
    %v227 = vunpack.c.l.b16 %v188
    %v228 = vunpack.c.l.b16 %v189
    %v229 = vunpack.c.l.b16 %v190
    %v230 = vunpack.c.l.b16 %v191
    %v231 = vunpack.c.l.b16 %v192
    %v232 = vpack.c.b16 %v217, %v216
    %v233 = vpack.c.b16 %v219, %v218
    %v234 = vpack.c.b16 %v221, %v220
    %v235 = vpack.c.b16 %v223, %v222
    %v236 = vpack.c.b16 %v225, %v224
    %v237 = vpack.c.b16 %v227, %v226
    %v238 = vpack.c.b16 %v229, %v228
    %v239 = vpack.c.b16 %v231, %v230
    %248 = vmatprep.subr.bf16.mxu0 0
    %249 = vmatpush1.bf16.msra.mxu0 %v232
    %250 = vmatprep.subr.bf16.mxu0 0
    %251 = vmatpush1.bf16.msra.mxu0 %v233
    %252 = vmatprep.subr.bf16.mxu0 0
    %253 = vmatpush1.bf16.msra.mxu0 %v234
    %254 = vmatprep.subr.bf16.mxu0 0
    %255 = vmatpush1.bf16.msra.mxu0 %v235
    %256 = vmatprep.subr.bf16.mxu0 0
    %257 = vmatpush1.bf16.msra.mxu0 %v236
    %258 = vmatprep.subr.bf16.mxu0 0
    %259 = vmatpush1.bf16.msra.mxu0 %v237
    %260 = vmatprep.subr.bf16.mxu0 0
    %261 = vmatpush1.bf16.msra.mxu0 %v238
    %262 = vmatprep.subr.bf16.mxu0 0
    %263 = vmatpush1.bf16.msra.mxu0 %v239
    %264 = vmatprep.subr.bf16.mxu0 0
    %265 = vmatpush1.bf16.msra.mxu0 0
    %266 = vmatprep.subr.bf16.mxu0 0
    %267 = vmatpush1.bf16.msra.mxu0 0
    %268 = vmatprep.subr.bf16.mxu0 0
    %269 = vmatpush1.bf16.msra.mxu0 0
    %270 = vmatprep.subr.bf16.mxu0 0
    %271 = vmatpush1.bf16.msra.mxu0 0
    %272 = vmatprep.subr.bf16.mxu0 0
    %273 = vmatpush1.bf16.msra.mxu0 0
    %274 = vmatprep.subr.bf16.mxu0 0
    %275 = vmatpush1.bf16.msra.mxu0 0
    %276 = vmatprep.subr.bf16.mxu0 0
    %277 = vmatpush1.bf16.msra.mxu0 0
    %278 = vmatprep.subr.bf16.mxu0 0
    %279 = vmatpush1.bf16.msra.mxu0 0
    %280 = vmatprep.mubr.bf16.mxu0 0
    %281 = vmatmul.mubr.bf16.gmra.mrb[0].mxu0 %v176
    %v282 = vpop.f32.mrb[0].mxu0
    %v283 = vadd.f32 %v198, %v282
    %v284 = vpop.f32.mrb[0].mxu0
    %v285 = vpop.f32.mrb[0].mxu0
    %v286 = vpop.f32.mrb[0].mxu0
    %287 = vdwg.mxu0
    %v288 = vmax.f32 %v283, 0.0
    %289 = vst [vmem:[#allocation8] sm:$0xff] %v288
    // Predicated region
    $region34: #{tpu_custom_call.1} parent=1 // pred_check
      _
    $region35: #{tpu_custom_call.1} parent=1 // pred_check_branch
      %291 = sbr.rel (0) target = $region37
    $region36: #{tpu_custom_call.1} parent=1 // pred_region
      %s293 = ssub.s32 128, 128
      %294 = vsyncadd [#allocation4], %s293
      %s296 = sshll.u32 [#allocation8], 4
      %s297 = int_to_ptr.vmem [resolvable:$true] %s296
      %299 = dma.vmem_to_hbm [thread:$0]  %s297, 128, %s5, [#allocation4]
    $region37: #{tpu_custom_call.1} parent=1 // pred_fallthru
      _
    // Predicated region
    $region38: #{tpu_custom_call.1} parent=1 // pred_check
      _
    $region39: #{tpu_custom_call.1} parent=1 // pred_check_branch
      %301 = sbr.rel (0) target = $region41
    $region40: #{tpu_custom_call.1} parent=1 // pred_region
      %302 = dma.done [#allocation4], 128
    $region41: #{tpu_custom_call.1} parent=1 // pred_fallthru
      _
    %303 = vsyncpa [#allocation3], 1
    %304 = vsyncpa [#allocation6], 1
    %305 = vsyncpa [#allocation4], 1

</llo_original>
